<compile_context>
chip_gen: v6e
topology: v6e:2x2x1
jax: 0.10.0
libtpu: 0.0.40
codegen_flags: <defaults>
</compile_context>

<pallas_src>
import jax
import jax.numpy as jnp
from jax import lax
from jax.experimental import pallas as pl
from jax.experimental.pallas import tpu as pltpu


def _linear_kernel(w_ref, x_ref, b_ref, o_ref):
    # w_ref: (out_dims, in_dims) resident; x_ref: (TM, in_dims) tile;
    # b_ref: (out_dims, 1); o_ref: (out_dims, TM) lane-dense along batch.
    acc = lax.dot_general(
        w_ref[...], x_ref[...],
        dimension_numbers=(((1,), (1,)), ((), ())),   # contract on in_dims
        preferred_element_type=jnp.float32,
    )                                                  # (out_dims, TM) f32
    o_ref[...] = (acc + b_ref[...]).astype(o_ref.dtype)


def _round_up(n: int, m: int) -> int:
    return ((n + m - 1) // m) * m


def linear_regression_forward(x: jax.Array, weight: jax.Array, bias: jax.Array,
                              *, tm_target: int = 512) -> jax.Array:
    """
    x:      (batch, in_dims)    float32
    weight: (out_dims, in_dims) float32   (PyTorch nn.Linear layout, used as-is)
    bias:   (out_dims,)         float32
    returns (batch, out_dims)   float32
    """
    batch, in_dims = x.shape
    out_dims = weight.shape[0]

    # Tile size: big enough to pipeline / reach HBM roofline, small enough that
    # 2x double-buffered (TM, in_dims) f32 tiles + resident W fit v7x's 64 MiB VMEM.
    if batch <= tm_target:
        padded_batch = _round_up(batch, 8)   # one full-extent block, 8-sublane aligned
        tm = padded_batch
    else:
        tm = tm_target                       # multiple of 8 (sublane) and 128 (lane)
        padded_batch = _round_up(batch, tm)

    if padded_batch != batch:
        x = jnp.pad(x, ((0, padded_batch - batch), (0, 0)))

    b2d = bias.reshape(out_dims, 1)          # broadcast over the lane (batch) axis
    grid = padded_batch // tm

    # NOTE: for tiny shapes (like the demo 8x32x1) plain XLA `x @ w.T + b` would be
    # faster than any custom kernel; the Pallas path is kept so the kernel runs here
    # and pays off at large batch / in_dims.
    y_t = pl.pallas_call(
        _linear_kernel,
        out_shape=jax.ShapeDtypeStruct((out_dims, padded_batch), x.dtype),
        grid_spec=pltpu.PrefetchScalarGridSpec(
            num_scalar_prefetch=0,
            grid=(grid,),
            in_specs=[
                pl.BlockSpec((out_dims, in_dims), lambda i: (0, 0)),  # W resident
                pl.BlockSpec((tm, in_dims), lambda i: (i, 0)),        # X batch tile
                pl.BlockSpec((out_dims, 1), lambda i: (0, 0)),        # bias resident
            ],
            out_specs=pl.BlockSpec((out_dims, tm), lambda i: (0, i)),  # lane-dense out
        ),
        compiler_params=pltpu.CompilerParams(
            dimension_semantics=("parallel",),        # independent rows -> both TCs on v7x
            vmem_limit_bytes=48 * 1024 * 1024,        # explicit headroom under v7x 64 MiB
        ),
    )(weight, x, b2d)

    # (out_dims, padded_batch) -> (batch, out_dims)
    return y_t[:, :batch].T


if __name__ == "__main__":
    key = jax.random.PRNGKey(0)
    k_x, k_w, k_b = jax.random.split(key, 3)

    batch, in_dims, out_dims = 8, 32, 1

    x = jax.random.normal(k_x, (batch, in_dims), dtype=jnp.float32)
    # Deterministic init mimicking nn.Linear's uniform(-1/sqrt(in), 1/sqrt(in)) range.
    bound = 1.0 / jnp.sqrt(jnp.float32(in_dims))
    weight = jax.random.uniform(k_w, (out_dims, in_dims), minval=-bound, maxval=bound,
                                dtype=jnp.float32)
    bias = jax.random.uniform(k_b, (out_dims,), minval=-bound, maxval=bound,
                              dtype=jnp.float32)

    y = linear_regression_forward(x, weight, bias)
    y = jax.block_until_ready(y)

    # Correctness check against pure-JAX reference.
    y_ref = x @ weight.T + bias
    assert y.shape == (batch, out_dims)
    assert jnp.allclose(y, y_ref, atol=1e-5, rtol=1e-5)

    print("KERNEL_OK")
</pallas_src>

<mosaic_0001>
module attributes {stable_mosaic.version = 11 : i64} {
  func.func @_linear_kernel(%arg0: i32, %arg1: memref<1x32xf32, #tpu.memory_space<vmem>>, %arg2: memref<8x32xf32, #tpu.memory_space<vmem>>, %arg3: memref<1x1xf32, #tpu.memory_space<vmem>>, %arg4: memref<1x8xf32, #tpu.memory_space<vmem>>) attributes {dimension_semantics = [#tpu.dimension_semantics<parallel>], iteration_bounds = array<i64: 1>, scalar_prefetch = 0 : i64, scratch_operands = 0 : i64, tpu.core_type = #tpu.core_type<tc>, window_params = [{pipeline_mode = #tpu.pipeline_mode<synchronous>, transform_indices = @transform_0, window_bounds = array<i64: 1, 32>}, {transform_indices = @transform_1, window_bounds = array<i64: 8, 32>}, {pipeline_mode = #tpu.pipeline_mode<synchronous>, transform_indices = @transform_2, window_bounds = array<i64: 1, 1>}, {transform_indices = @transform_3, window_bounds = array<i64: 1, 8>}]} {
    %c0 = arith.constant 0 : index
    %c0_0 = arith.constant 0 : index
    %0 = vector.load %arg1[%c0, %c0_0] : memref<1x32xf32, #tpu.memory_space<vmem>>, vector<1x32xf32>
    %c0_1 = arith.constant 0 : index
    %c0_2 = arith.constant 0 : index
    %1 = vector.load %arg2[%c0_1, %c0_2] : memref<8x32xf32, #tpu.memory_space<vmem>>, vector<8x32xf32>
    %cst = arith.constant dense<0.000000e+00> : vector<1x8xf32>
    %2 = tpu.matmul %0, %1, %cst {dimension_numbers = #tpu.dot_dimension_numbers<[1], [1], [0], [0], [0, 0, 1, 0], [], []>} : vector<1x32xf32>, vector<8x32xf32>, vector<1x8xf32> -> vector<1x8xf32>
    %c0_3 = arith.constant 0 : index
    %c0_4 = arith.constant 0 : index
    %3 = vector.load %arg3[%c0_3, %c0_4] : memref<1x1xf32, #tpu.memory_space<vmem>>, vector<1x1xf32>
    %4 = vector.broadcast %3 : vector<1x1xf32> to vector<1x8xf32>
    %5 = arith.addf %2, %4 : vector<1x8xf32>
    %c0_5 = arith.constant 0 : index
    %c0_6 = arith.constant 0 : index
    %6 = vector.load %arg4[%c0_5, %c0_6] : memref<1x8xf32, #tpu.memory_space<vmem>>, vector<1x8xf32>
    tpu.vector_store %arg4[%c0_5, %c0_6], %5 {strides = array<i32>} : memref<1x8xf32, #tpu.memory_space<vmem>>, vector<1x8xf32>,
    return
  }
  func.func @transform_0(%arg0: i32) -> (i32, i32) {
    %c0_i32 = arith.constant 0 : i32
    %c0_i32_0 = arith.constant 0 : i32
    %c0_i32_1 = arith.constant 0 : i32
    return %c0_i32, %c0_i32_0 : i32, i32
  }
  func.func @transform_1(%arg0: i32) -> (i32, i32) {
    %c0_i32 = arith.constant 0 : i32
    %c0_i32_0 = arith.constant 0 : i32
    return %arg0, %c0_i32 : i32, i32
  }
  func.func @transform_2(%arg0: i32) -> (i32, i32) {
    %c0_i32 = arith.constant 0 : i32
    %c0_i32_0 = arith.constant 0 : i32
    %c0_i32_1 = arith.constant 0 : i32
    return %c0_i32, %c0_i32_0 : i32, i32
  }
  func.func @transform_3(%arg0: i32) -> (i32, i32) {
    %c0_i32 = arith.constant 0 : i32
    %c0_i32_0 = arith.constant 0 : i32
    return %c0_i32, %arg0 : i32, i32
  }
}

</mosaic_0001>

<llo_original>
// kernel: tpu_custom_call.1
$region0: #{tpu_custom_call.1}
  #allocation0 [shape = 'u32[]', space=smem, size = 0x4, offset = 0x4, fixed_abs, tag = 'smem constant byte address 0x4 - core index']
  #allocation1 [shape = 'u32[144,128]{1,0:T(1,128)}', space=vmem, size = 0x12000, scoped, tag = 'internal scratch']
  #allocation2 [shape = 'f32[1,1]{1,0:T(1,128)S(1)}', space=vmem, size = 0x200, scoped, tag = 'scoped memory for tpu_custom_call.1']
  %s0 = inlined_call_operand.vmem [shape: f32[1,32], index: 0, kind: input, shape index: {}]
  %s1 = inlined_call_operand.hbm [shape: f32[8,32], index: 1, kind: input, shape index: {}]
  %s2 = inlined_call_operand.<no memory space> [shape: f32[1,1], index: 2, kind: input, shape index: {}]
  %s3 = inlined_call_operand.hbm [shape: f32[1,8], index: 3, kind: output, shape index: {}]
  %s4 = sld [smem:[#allocation0]]
  $region26: #{tpu_custom_call.1} parent=0
    _
  %s6 = ssub.s32 1, %s4
  %s7 = scalar_select 0, %s6, %s4
  %v8 = vstv %s2
  %9 = vst [vmem:[#allocation2] sm:$0x1] %v8
  $region1: #{tpu_custom_call.1} parent=0
    #allocation3 [shape = 'u8[4096]{0}', space=vmem, size = 0x1000, scoped, tag = 'input window, operand 1, single buffered']
    #allocation4 [shape = 's32[1]{0}', space=sflag, size = 0x4, scoped, tag = 'scoped memory for tpu_custom_call.1']
    #allocation5 [shape = 's32[1]{0}', space=sflag, size = 0x4, scoped, tag = 'scoped memory for tpu_custom_call.1']
    #allocation6 [shape = 'u8[512]{0}', space=vmem, size = 0x400, scoped, tag = 'output window, operand 0, single buffered']
    %10 = vsyncpa [#allocation4], 0
    %11 = vsyncpa [#allocation5], 0
    // Predicated region
    $region2: #{tpu_custom_call.1} parent=1 // pred_check
      _
    $region3: #{tpu_custom_call.1} parent=1 // pred_check_branch
      %13 = sbr.rel (0) target = $region5
    $region4: #{tpu_custom_call.1} parent=1 // pred_region
      _
    $region5: #{tpu_custom_call.1} parent=1 // pred_fallthru
      _
    // Predicated region
    $region6: #{tpu_custom_call.1} parent=1 // pred_check
      _
    $region7: #{tpu_custom_call.1} parent=1 // pred_check_branch
      %15 = sbr.rel (0) target = $region9
    $region8: #{tpu_custom_call.1} parent=1 // pred_region
      %s17 = ssub.s32 128, 128
      %18 = vsyncadd [#allocation4], %s17
      %s20 = sshll.u32 [#allocation3], 4
      %s21 = int_to_ptr.vmem [resolvable:$true] %s20
      %23 = dma.hbm_to_vmem [thread:$0]  %s1, 128, %s21, [#allocation4]
    $region9: #{tpu_custom_call.1} parent=1 // pred_fallthru
      _
    // Predicated region
    $region10: #{tpu_custom_call.1} parent=1 // pred_check
      _
    $region11: #{tpu_custom_call.1} parent=1 // pred_check_branch
      %25 = sbr.rel (0) target = $region13
    $region12: #{tpu_custom_call.1} parent=1 // pred_region
      _
    $region13: #{tpu_custom_call.1} parent=1 // pred_fallthru
      _
    // Predicated region
    $region14: #{tpu_custom_call.1} parent=1 // pred_check
      _
    $region15: #{tpu_custom_call.1} parent=1 // pred_check_branch
      %27 = sbr.rel (0) target = $region17
    $region16: #{tpu_custom_call.1} parent=1 // pred_region
      %28 = dma.done [#allocation4], 128
    $region17: #{tpu_custom_call.1} parent=1 // pred_fallthru
      _
    %v29 = vld [vmem:[%s0] sm:$0x1]
    %v30 = vld [vmem:[#allocation3] sm:$0xff]
    %v31 = vld [vmem:[#allocation2] sm:$0x1]
    %33 = vset.pattern.permute.xlu0 0
    %34 = vperm.xlu0 %33, %v31
    %v35 = vpop.permute.xlu0 %34
    %v37 = vlaneseq
    %v38 = vshrl.u32 %v37, 7
    %v39 = vsub.s32 0, %v38
    %v40 = vrot.slane %v35, %v39
    %vm41 = vcmask 261120
    %v43 = vsel %vm41, %v29, 0
    %v46 = vsel %vm41, %v30, 0
    %48 = vmatprep.subr.mxu0 0.0
    %49 = vmatpush1.xpose.msra.mxu0 0.0
    %50 = vmatprep.subr.mxu0 0.0
    %51 = vmatpush1.xpose.msra.mxu0 0.0
    %52 = vmatprep.subr.mxu0 0.0
    %53 = vmatpush1.xpose.msra.mxu0 0.0
    %54 = vmatprep.subr.mxu0 0.0
    %55 = vmatpush1.xpose.msra.mxu0 0.0
    %56 = vmatprep.subr.mxu0 0.0
    %57 = vmatpush1.xpose.msra.mxu0 0.0
    %58 = vmatprep.subr.mxu0 0.0
    %59 = vmatpush1.xpose.msra.mxu0 0.0
    %60 = vmatprep.subr.mxu0 0.0
    %61 = vmatpush1.xpose.msra.mxu0 0.0
    %62 = vmatprep.subr.mxu0 0.0
    %63 = vmatpush1.xpose.msra.mxu0 0.0
    %64 = vmatprep.subr.mxu0 0.0
    %65 = vmatpush1.xpose.msra.mxu0 0.0
    %66 = vmatprep.subr.mxu0 0.0
    %67 = vmatpush1.xpose.msra.mxu0 0.0
    %68 = vmatprep.subr.mxu0 0.0
    %69 = vmatpush1.xpose.msra.mxu0 0.0
    %70 = vmatprep.subr.mxu0 0.0
    %71 = vmatpush1.xpose.msra.mxu0 0.0
    %72 = vmatprep.subr.mxu0 0.0
    %73 = vmatpush1.xpose.msra.mxu0 0.0
    %74 = vmatprep.subr.mxu0 0.0
    %75 = vmatpush1.xpose.msra.mxu0 0.0
    %76 = vmatprep.subr.mxu0 0.0
    %77 = vmatpush1.xpose.msra.mxu0 0.0
    %78 = vmatprep.subr.mxu0 0.0
    %79 = vmatpush1.xpose.msra.mxu0 %v46
    %80 = vmatprep.subr.mxu0 0.0
    %81 = vmatpush2.xpose.msra.mxu0 0.0
    %82 = vmatprep.subr.mxu0 0.0
    %83 = vmatpush2.xpose.msra.mxu0 0.0
    %84 = vmatprep.subr.mxu0 0.0
    %85 = vmatpush2.xpose.msra.mxu0 0.0
    %86 = vmatprep.subr.mxu0 0.0
    %87 = vmatpush2.xpose.msra.mxu0 0.0
    %88 = vmatprep.subr.mxu0 0.0
    %89 = vmatpush2.xpose.msra.mxu0 0.0
    %90 = vmatprep.subr.mxu0 0.0
    %91 = vmatpush2.xpose.msra.mxu0 0.0
    %92 = vmatprep.subr.mxu0 0.0
    %93 = vmatpush2.xpose.msra.mxu0 0.0
    %94 = vmatprep.subr.mxu0 0.0
    %95 = vmatpush2.xpose.msra.mxu0 0.0
    %96 = vmatprep.subr.mxu0 0.0
    %97 = vmatpush2.xpose.msra.mxu0 0.0
    %98 = vmatprep.subr.mxu0 0.0
    %99 = vmatpush2.xpose.msra.mxu0 0.0
    %100 = vmatprep.subr.mxu0 0.0
    %101 = vmatpush2.xpose.msra.mxu0 0.0
    %102 = vmatprep.subr.mxu0 0.0
    %103 = vmatpush2.xpose.msra.mxu0 0.0
    %104 = vmatprep.subr.mxu0 0.0
    %105 = vmatpush2.xpose.msra.mxu0 0.0
    %106 = vmatprep.subr.mxu0 0.0
    %107 = vmatpush2.xpose.msra.mxu0 0.0
    %108 = vmatprep.subr.mxu0 0.0
    %109 = vmatpush2.xpose.msra.mxu0 0.0
    %110 = vmatprep.subr.mxu0 0.0
    %111 = vmatpush2.xpose.msra.mxu0 0.0
    %112 = vmatprep.mubr.f32.mxu0 0.0
    %113 = vmatmul.mubr.f32.gmra.mxu0 %v43
    %v114 = vpop.f32.mrf.mxu0
    %v115 = vadd.f32 %v40, %v114
    %v116 = vpop.f32.mrf.mxu0
    %117 = vdwg.mxu0
    %vm118 = vcmask 57344
    %119 = vst.msk [vmem:[#allocation6] sm:$0x1] %vm118, %v115
    // Predicated region
    $region18: #{tpu_custom_call.1} parent=1 // pred_check
      _
    $region19: #{tpu_custom_call.1} parent=1 // pred_check_branch
      %121 = sbr.rel (0) target = $region21
    $region20: #{tpu_custom_call.1} parent=1 // pred_region
      %s123 = ssub.s32 16, 16
      %124 = vsyncadd [#allocation5], %s123
      %s126 = sshll.u32 [#allocation6], 4
      %s127 = int_to_ptr.vmem [resolvable:$true] %s126
      %129 = dma.vmem_to_hbm [thread:$0]  %s127, 16, %s3, [#allocation5]
    $region21: #{tpu_custom_call.1} parent=1 // pred_fallthru
      _
    // Predicated region
    $region22: #{tpu_custom_call.1} parent=1 // pred_check
      _
    $region23: #{tpu_custom_call.1} parent=1 // pred_check_branch
      %131 = sbr.rel (0) target = $region25
    $region24: #{tpu_custom_call.1} parent=1 // pred_region
      %132 = dma.done [#allocation5], 16
    $region25: #{tpu_custom_call.1} parent=1 // pred_fallthru
      _
    %133 = vsyncpa [#allocation4], 1
    %134 = vsyncpa [#allocation5], 1

</llo_original>
